<compile_context>
chip_gen: v7x
topology: tpu7x:2x2x1
jax: 0.10.0
libtpu: 0.0.40
codegen_flags: <defaults>
</compile_context>

<pallas_src>
import functools
import math

import jax
import jax.numpy as jnp
from jax.experimental import pallas as pl
from jax.experimental.pallas import tpu as pltpu

LANE = 128  # pad all head output widths to lane-dense 128 columns


def _round_up(v, m):
    return ((v + m - 1) // m) * m


def _largest_divisor_leq(n, cap):
    for d in range(min(n, cap), 0, -1):
        if n % d == 0:
            return d
    return 1


# ----------------------------------------------------------------------------
# Pallas kernel 1: fused 3x3 conv + ReLU (backbone), Nb images per grid step.
# Single K=9*Cin MXU matmul per step; emits bf16 feature '0' + f32 global sum.
# ----------------------------------------------------------------------------
def _conv3x3_kernel(xp_ref, w_ref, b_ref, feat_ref, sum_ref, *, hf, wf, cin):
    xp = xp_ref[...]                                   # (nb, hf+2, wf+2, cin) bf16
    nb = xp.shape[0]
    cout = feat_ref.shape[-1]
    taps = []
    for t in range(9):                                 # static unroll, layout only
        dy, dx = t // 3, t % 3
        taps.append(xp[:, dy:dy + hf, dx:dx + wf, :].reshape(nb * hf * wf, cin))
    lhs = jnp.concatenate(taps, axis=-1)               # (nb*HW, 9*cin) bf16
    acc = jnp.dot(lhs, w_ref[...], preferred_element_type=jnp.float32)
    acc = jnp.maximum(acc + b_ref[...], 0.0)           # (nb*HW, cout) f32
    acc = acc.reshape(nb, hf * wf, cout)
    feat_ref[...] = acc.astype(jnp.bfloat16)           # bf16 feature '0'
    sum_ref[...] = jnp.sum(acc, axis=1, keepdims=True)  # (nb, 1, cout) f32 global sum


def pallas_conv3x3_relu(x_nhwc, w, b, nb=None):
    """x_nhwc: (N,H,W,Cin) f32; w: (9*Cin,Cout) bf16; b: (1,Cout) f32.
    Returns (feat_bf16 (N,H*W,Cout), global_sum_f32 (N,1,Cout))."""
    N, H, W, Cin = x_nhwc.shape
    Cout = w.shape[-1]
    if nb is None:
        nb = _largest_divisor_leq(N, 4)
    # cast ONCE then pad: halves the HBM->VMEM bytes of the largest input block
    xp = jnp.pad(x_nhwc.astype(jnp.bfloat16), ((0, 0), (1, 1), (1, 1), (0, 0)))
    return pl.pallas_call(
        functools.partial(_conv3x3_kernel, hf=H, wf=W, cin=Cin),
        out_shape=(jax.ShapeDtypeStruct((N, H * W, Cout), jnp.bfloat16),
                   jax.ShapeDtypeStruct((N, 1, Cout), jnp.float32)),
        grid=(N // nb,),
        in_specs=[
            pl.BlockSpec((nb, H + 2, W + 2, Cin), lambda n: (n, 0, 0, 0)),
            pl.BlockSpec((9 * Cin, Cout), lambda n: (0, 0)),
            pl.BlockSpec((1, Cout), lambda n: (0, 0)),
        ],
        out_specs=(pl.BlockSpec((nb, H * W, Cout), lambda n: (n, 0, 0)),
                   pl.BlockSpec((nb, 1, Cout), lambda n: (n, 0, 0))),
        compiler_params=pltpu.CompilerParams(
            dimension_semantics=("parallel",),
            vmem_limit_bytes=32 << 20),
    )(xp, w, b)


# ----------------------------------------------------------------------------
# Pallas kernel 2: linear (out = relu?(x @ w + b)), M-tiled, lane-dense output.
# ----------------------------------------------------------------------------
def _linear_kernel(x_ref, w_ref, b_ref, o_ref, *, relu):
    acc = jnp.dot(x_ref[...], w_ref[...], preferred_element_type=jnp.float32)
    acc = acc + b_ref[...]
    if relu:
        acc = jnp.maximum(acc, 0.0)
    o_ref[...] = acc.astype(o_ref.dtype)


def pallas_linear(x, w, b, relu=False, tm=256):
    """x: (M,K) f32; w: (K,Nc) bf16, Nc lane-dense (128-padded); b: (Nc,) f32."""
    M, K = x.shape
    _, Nc = w.shape
    tm = min(tm, _round_up(M, 16))          # multiple of 16 sublanes (bf16)
    Mp = _round_up(M, tm)                   # zero-pad M; grid = Mp // tm
    xb = x.astype(jnp.bfloat16)
    if Mp != M:
        xb = jnp.pad(xb, ((0, Mp - M), (0, 0)))
    # TODO(synk): for large K add a trailing "arbitrary" K-reduction grid axis
    # with an f32 VMEM scratch accumulator; K<=128 here so a single block fits.
    out = pl.pallas_call(
        functools.partial(_linear_kernel, relu=relu),
        out_shape=jax.ShapeDtypeStruct((Mp, Nc), jnp.float32),
        grid=(Mp // tm,),
        in_specs=[
            pl.BlockSpec((tm, K), lambda i: (i, 0)),
            pl.BlockSpec((K, Nc), lambda i: (0, 0)),
            pl.BlockSpec((1, Nc), lambda i: (0, 0)),
        ],
        out_specs=pl.BlockSpec((tm, Nc), lambda i: (i, 0)),
        compiler_params=pltpu.CompilerParams(
            dimension_semantics=("parallel",)),
    )(xb, w, b.reshape(1, Nc))
    return out[:M]


# ----------------------------------------------------------------------------
# Pallas kernel 3: RoI masked-average pooling over feature '0' + fused second
# (roi) head.  Nb images per grid step folded into the matmul M dimension with
# a block-diagonal mask; trailing "arbitrary" HW-chunk reduction axis with an
# f32 scratch accumulator; fused head + reciprocal in the last-chunk epilogue.
# ----------------------------------------------------------------------------
def _roi_pool_head_kernel(boxes_ref, feat_ref, w_ref, b_ref, o_ref, acc_ref,
                          *, wf, rows_chunk, nb, p):
    k = pl.program_id(1)

    @pl.when(k == 0)
    def _():
        acc_ref[...] = jnp.zeros_like(acc_ref)

    b = boxes_ref[...]                                 # (nb, p, 4) quantized, f32
    x1 = b[..., 0].reshape(nb * p, 1)
    y1 = b[..., 1].reshape(nb * p, 1)
    x2 = b[..., 2].reshape(nb * p, 1)
    y2 = b[..., 3].reshape(nb * p, 1)

    chunk_hw = rows_chunk * wf
    row0 = (k * rows_chunk).astype(jnp.float32)
    # in-kernel pixel coordinates for this row-chunk (no //, % needed)
    ys = (jax.lax.broadcasted_iota(jnp.float32, (nb, rows_chunk, wf), 1)
          + row0).reshape(1, nb * chunk_hw)
    xs = jax.lax.broadcasted_iota(
        jnp.float32, (nb, rows_chunk, wf), 2).reshape(1, nb * chunk_hw)
    col_img = jax.lax.broadcasted_iota(
        jnp.int32, (nb, rows_chunk, wf), 0).reshape(1, nb * chunk_hw)
    row_img = jax.lax.broadcasted_iota(
        jnp.int32, (nb, p), 0).reshape(nb * p, 1)

    # block-diagonal in-box mask: (nb*p, nb*chunk_hw)
    mask = ((xs >= x1) & (xs < x2) & (ys >= y1) & (ys < y2)
            & (col_img == row_img))

    feat = feat_ref[...].reshape(nb * chunk_hw, -1)    # (nb*chunk_hw, C) bf16
    # masked partial sum on the MXU, accumulated in f32 scratch
    acc_ref[...] = acc_ref[...] + jnp.dot(
        mask.astype(jnp.bfloat16), feat, preferred_element_type=jnp.float32)

    @pl.when(k == pl.num_programs(1) - 1)
    def _():
        # analytic pixel count from clipped integer bounds (no extra reduce)
        cnt = jnp.maximum(
            jnp.maximum(x2 - x1, 0.0) * jnp.maximum(y2 - y1, 0.0), 1.0)
        pooled = acc_ref[...] * pl.reciprocal(cnt, approx=False)   # (nb*p, C)
        out = jnp.dot(pooled.astype(jnp.bfloat16), w_ref[...],
                      preferred_element_type=jnp.float32) + b_ref[...]
        o_ref[...] = out.reshape(nb, p, -1)


def pallas_roi_pool_head(boxes_q, feat_flat, roi_w, roi_b, hf, wf,
                         nb=None, rows_per_chunk=None):
    """boxes_q: (N,P,4) f32 integer-valued bounds in feature coords;
    feat_flat: (N, hf*wf, C) bf16 feature '0'.  Returns (N, P, 128) f32."""
    N, P, _ = boxes_q.shape
    HW, C = feat_flat.shape[1], feat_flat.shape[2]
    if nb is None:
        nb = _largest_divisor_leq(N, 4)
    # HW-reduction chunking (rows of the feature map) — keep chunk_hw tiled.
    if (rows_per_chunk is None or hf % rows_per_chunk != 0
            or (rows_per_chunk != hf and (rows_per_chunk * wf) % 16 != 0)):
        rows_per_chunk = hf
    num_chunks = hf // rows_per_chunk
    chunk_hw = rows_per_chunk * wf

    return pl.pallas_call(
        functools.partial(_roi_pool_head_kernel, wf=wf,
                          rows_chunk=rows_per_chunk, nb=nb, p=P),
        out_shape=jax.ShapeDtypeStruct((N, P, LANE), jnp.float32),
        grid=(N // nb, num_chunks),
        in_specs=[
            pl.BlockSpec((nb, P, 4), lambda n, k: (n, 0, 0)),
            pl.BlockSpec((nb, chunk_hw, C), lambda n, k: (n, k, 0)),
            pl.BlockSpec((C, LANE), lambda n, k: (0, 0)),
            pl.BlockSpec((1, LANE), lambda n, k: (0, 0)),
        ],
        out_specs=pl.BlockSpec((nb, P, LANE), lambda n, k: (n, 0, 0)),
        scratch_shapes=[pltpu.VMEM((nb * P, C), jnp.float32)],
        compiler_params=pltpu.CompilerParams(
            dimension_semantics=("parallel", "arbitrary"),
            vmem_limit_bytes=32 << 20),
    )(boxes_q, feat_flat, roi_w, roi_b)


# ----------------------------------------------------------------------------
# Plain-JAX glue (stem pool / box expand / decode), mirroring the module
# ----------------------------------------------------------------------------
def avgpool2(x):  # NHWC 2x2 average pool (backbone stem)
    N, H, W, C = x.shape
    return x.reshape(N, H // 2, 2, W // 2, 2, C).mean(axis=(2, 4))


def get_strides(image_size, grid_sizes):
    # exact port of MixRCNNMulRoIHead.get_strides (grid sizes are (h, w))
    h, w = image_size
    return tuple(
        math.pow(2, math.ceil(math.log2((h / g[0] + w / g[1]) / 2)))
        for g in grid_sizes)


def expand_boxes_batch(boxes, image_sizes, ratio=0.2):
    """Plain-JAX port of expand_boxes over the batch (fused by XLA).
    boxes: (N,P,4) xyxy f32; image_sizes: list of (H,W)."""
    widths = jnp.array([float(s[1]) for s in image_sizes], jnp.float32)[:, None]
    heights = jnp.array([float(s[0]) for s in image_sizes], jnp.float32)[:, None]
    x1, y1, x2, y2 = (boxes[..., 0], boxes[..., 1], boxes[..., 2], boxes[..., 3])
    half = (ratio + 1.0) * 0.5
    w_half = (x2 - x1) * half
    h_half = (y2 - y1) * half
    xc = (x2 + x1) * 0.5
    yc = (y2 + y1) * 0.5
    nx1 = jnp.clip(xc - w_half, 0.0, widths)
    ny1 = jnp.clip(yc - h_half, 0.0, heights)
    nx2 = jnp.clip(xc + w_half, 0.0, widths)
    ny2 = jnp.clip(yc + h_half, 0.0, heights)
    return jnp.stack([nx1, ny1, nx2, ny2], axis=-1)


def init_params(key, cin=4, c0=128, num_props=4, num_classes=3):
    ks = jax.random.split(key, 3)
    n1 = num_props * 5
    n2 = 4 + num_classes
    human_w = jnp.pad(0.1 * jax.random.normal(ks[1], (c0, n1), jnp.float32),
                      ((0, 0), (0, LANE - n1)))
    roi_w = jnp.pad(0.1 * jax.random.normal(ks[2], (c0, n2), jnp.float32),
                    ((0, 0), (0, LANE - n2)))
    return {
        "backbone_w": (0.1 * jax.random.normal(ks[0], (9 * cin, c0), jnp.float32)
                       ).astype(jnp.bfloat16),           # (9*Cin, C0) single K
        "backbone_b": jnp.zeros((1, c0), jnp.float32),
        "human_w": human_w.astype(jnp.bfloat16),          # (C0, 128) lane-dense
        "human_b": jnp.zeros((LANE,), jnp.float32),
        "roi_w": roi_w.astype(jnp.bfloat16),              # (C0, 128) lane-dense
        "roi_b": jnp.zeros((LANE,), jnp.float32),
        "num_props": num_props,
        "num_classes": num_classes,
        "expand_ratio": 0.2,
    }


def forward(params, inputs):
    data = inputs["data"]                       # (N, Cin, H, W) — PyTorch NCHW
    N, Cin, Himg, Wimg = data.shape
    x = jnp.transpose(data, (0, 2, 3, 1))       # -> NHWC (channels on lanes)
    P = params["num_props"]
    NC = params["num_classes"]

    # --- backbone (+ implicit neck=None) ---
    x0 = avgpool2(x)                                        # (N, H/2, W/2, Cin)
    Hf, Wf = x0.shape[1:3]
    # fused conv3x3+ReLU -> bf16 feature '0' + f32 global sum (feeds 1st head)
    f0_flat, f0_sum = pallas_conv3x3_relu(
        x0, params["backbone_w"], params["backbone_b"])     # (N,HW,C0), (N,1,C0)
    C0 = f0_flat.shape[-1]

    # feature pyramid levels '1'..'3' are only needed for static grid sizes
    grid_sizes = [(Hf, Wf)]
    gh, gw = Hf, Wf
    for _ in range(3):
        gh, gw = gh // 2, gw // 2
        grid_sizes.append((gh, gw))
    strides = get_strides((Himg, Wimg), grid_sizes)
    stride_second = strides[0]

    # --- first (human detection) head: global mean of feature '0' ---
    pooled = f0_sum.reshape(N, C0) / float(Hf * Wf)
    head_out = pallas_linear(pooled, params["human_w"],
                             params["human_b"])[:, :P * 5].reshape(N, P, 5)
    cx = jax.nn.sigmoid(head_out[..., 0]) * Wimg
    cy = jax.nn.sigmoid(head_out[..., 1]) * Himg
    bw = jax.nn.sigmoid(head_out[..., 2]) * Wimg
    bh = jax.nn.sigmoid(head_out[..., 3]) * Himg
    hx1 = jnp.clip(cx - bw / 2, 0.0, float(Wimg))
    hy1 = jnp.clip(cy - bh / 2, 0.0, float(Himg))
    hx2 = jnp.clip(cx + bw / 2, 0.0, float(Wimg))
    hy2 = jnp.clip(cy + bh / 2, 0.0, float(Himg))
    human_boxes = jnp.stack([hx1, hy1, hx2, hy2], axis=-1)  # (N, P, 4)
    human_scores = jax.nn.sigmoid(head_out[..., 4])         # (N, P)

    # score>0.5 selection with argmax fallback.
    # TODO(synk): ragged per-image box lists have no static-shape equivalent;
    # a fixed P proposals flow through and `keep_mask` carries the selection.
    keep = human_scores > 0.5
    any_keep = keep.any(axis=1, keepdims=True)
    fallback = jnp.arange(P)[None, :] == jnp.argmax(human_scores, axis=1)[:, None]
    keep_mask = jnp.where(any_keep, keep, fallback)

    human_results = {
        "boxes": [human_boxes[i] for i in range(N)],
        "scores": [human_scores[i] for i in range(N)],
        "keep_mask": [keep_mask[i] for i in range(N)],
    }

    # --- expand_boxes_batch + stride quantization: plain fused XLA elementwise ---
    human_proposals = expand_boxes_batch(
        human_boxes, inputs["image_sizes"], params["expand_ratio"])  # (N,P,4)
    bf = human_proposals / stride_second
    ix1 = jnp.clip(jnp.floor(bf[..., 0]), 0.0, float(Wf))
    iy1 = jnp.clip(jnp.floor(bf[..., 1]), 0.0, float(Hf))
    ix2 = jnp.clip(jnp.ceil(bf[..., 2]), 0.0, float(Wf))
    iy2 = jnp.clip(jnp.ceil(bf[..., 3]), 0.0, float(Hf))
    boxes_q = jnp.stack([ix1, iy1, ix2, iy2], axis=-1)      # (N, P, 4) f32

    # --- roi pooler on feature '0' at stride_second (+ fused second head) ---
    # rows_per_chunk = Hf//2 exercises the HW-reduction tiling; production
    # would auto-size it against the VMEM budget (v7x: 64 MiB / 32 MiB scoped).
    roi_out_full = pallas_roi_pool_head(
        boxes_q, f0_flat, params["roi_w"], params["roi_b"].reshape(1, LANE),
        Hf, Wf, rows_per_chunk=max(1, Hf // 2))             # (N, P, 128)

    # --- second (roi detection) head decode ---
    roi_out = roi_out_full.reshape(N * P, LANE)[:, :4 + NC]
    deltas = roi_out[:, :4]
    logits = roi_out[:, 4:]
    probs = jax.nn.softmax(logits, axis=-1)
    roi_scores = jnp.max(probs, axis=-1).reshape(N, P)
    roi_labels = jnp.argmax(probs, axis=-1).astype(jnp.int32).reshape(N, P)
    roi_boxes = (human_proposals.reshape(N * P, 4) + deltas).reshape(N, P, 4)

    # --- post_process: per-image scale division ---
    results = {"boxes": [], "scores": [], "labels": []}
    for i in range(N):
        b = roi_boxes[i]
        if "scale" in inputs:
            b = b / inputs["scale"][i]
        results["boxes"].append(b)
        results["scores"].append(roi_scores[i])
        results["labels"].append(roi_labels[i])

    # test_mode == 'both'
    return human_results, results


if __name__ == "__main__":
    key = jax.random.PRNGKey(0)
    N, Cin, Himg, Wimg = 2, 4, 16, 16
    data = jax.random.normal(key, (N, Cin, Himg, Wimg), dtype=jnp.float32)
    inputs = {
        "data": data,
        "image_sizes": [(Himg, Wimg)] * N,
        "scale": jnp.array([1.0, 2.0], dtype=jnp.float32),
    }
    params = init_params(jax.random.PRNGKey(0), cin=Cin)

    human_results, results = forward(params, inputs)
    jax.block_until_ready((human_results, results))
    print("KERNEL_OK")
</pallas_src>

<mosaic_0001>
module attributes {stable_mosaic.version = 11 : i64} {
  func.func @_conv3x3_kernel(%arg0: i32, %arg1: memref<2x10x10x4xbf16, #tpu.memory_space<vmem>>, %arg2: memref<36x128xbf16, #tpu.memory_space<vmem>>, %arg3: memref<1x128xf32, #tpu.memory_space<vmem>>, %arg4: memref<2x64x128xbf16, #tpu.memory_space<vmem>>, %arg5: memref<2x1x128xf32, #tpu.memory_space<vmem>>) attributes {dimension_semantics = [#tpu.dimension_semantics<parallel>], iteration_bounds = array<i64: 1>, scalar_prefetch = 0 : i64, scratch_operands = 0 : i64, tpu.core_type = #tpu.core_type<tc>, window_params = [{transform_indices = @transform_0, window_bounds = array<i64: 2, 10, 10, 4>}, {pipeline_mode = #tpu.pipeline_mode<synchronous>, transform_indices = @transform_1, window_bounds = array<i64: 36, 128>}, {pipeline_mode = #tpu.pipeline_mode<synchronous>, transform_indices = @transform_2, window_bounds = array<i64: 1, 128>}, {transform_indices = @transform_3, window_bounds = array<i64: 2, 64, 128>}, {transform_indices = @transform_4, window_bounds = array<i64: 2, 1, 128>}]} {
    %c0 = arith.constant 0 : index
    %c0_0 = arith.constant 0 : index
    %c0_1 = arith.constant 0 : index
    %c0_2 = arith.constant 0 : index
    %0 = vector.load %arg1[%c0, %c0_0, %c0_1, %c0_2] : memref<2x10x10x4xbf16, #tpu.memory_space<vmem>>, vector<2x10x10x4xbf16>
    %1 = vector.extract_strided_slice %0 {offsets = [0, 0, 0, 0], sizes = [2, 8, 8, 4], strides = [1, 1, 1, 1]} : vector<2x10x10x4xbf16> to vector<2x8x8x4xbf16>
    %2 = vector.shape_cast %1 : vector<2x8x8x4xbf16> to vector<128x4xbf16>
    %3 = vector.extract_strided_slice %0 {offsets = [0, 0, 1, 0], sizes = [2, 8, 8, 4], strides = [1, 1, 1, 1]} : vector<2x10x10x4xbf16> to vector<2x8x8x4xbf16>
    %4 = vector.shape_cast %3 : vector<2x8x8x4xbf16> to vector<128x4xbf16>
    %5 = vector.extract_strided_slice %0 {offsets = [0, 0, 2, 0], sizes = [2, 8, 8, 4], strides = [1, 1, 1, 1]} : vector<2x10x10x4xbf16> to vector<2x8x8x4xbf16>
    %6 = vector.shape_cast %5 : vector<2x8x8x4xbf16> to vector<128x4xbf16>
    %7 = vector.extract_strided_slice %0 {offsets = [0, 1, 0, 0], sizes = [2, 8, 8, 4], strides = [1, 1, 1, 1]} : vector<2x10x10x4xbf16> to vector<2x8x8x4xbf16>
    %8 = vector.shape_cast %7 : vector<2x8x8x4xbf16> to vector<128x4xbf16>
    %9 = vector.extract_strided_slice %0 {offsets = [0, 1, 1, 0], sizes = [2, 8, 8, 4], strides = [1, 1, 1, 1]} : vector<2x10x10x4xbf16> to vector<2x8x8x4xbf16>
    %10 = vector.shape_cast %9 : vector<2x8x8x4xbf16> to vector<128x4xbf16>
    %11 = vector.extract_strided_slice %0 {offsets = [0, 1, 2, 0], sizes = [2, 8, 8, 4], strides = [1, 1, 1, 1]} : vector<2x10x10x4xbf16> to vector<2x8x8x4xbf16>
    %12 = vector.shape_cast %11 : vector<2x8x8x4xbf16> to vector<128x4xbf16>
    %13 = vector.extract_strided_slice %0 {offsets = [0, 2, 0, 0], sizes = [2, 8, 8, 4], strides = [1, 1, 1, 1]} : vector<2x10x10x4xbf16> to vector<2x8x8x4xbf16>
    %14 = vector.shape_cast %13 : vector<2x8x8x4xbf16> to vector<128x4xbf16>
    %15 = vector.extract_strided_slice %0 {offsets = [0, 2, 1, 0], sizes = [2, 8, 8, 4], strides = [1, 1, 1, 1]} : vector<2x10x10x4xbf16> to vector<2x8x8x4xbf16>
    %16 = vector.shape_cast %15 : vector<2x8x8x4xbf16> to vector<128x4xbf16>
    %17 = vector.extract_strided_slice %0 {offsets = [0, 2, 2, 0], sizes = [2, 8, 8, 4], strides = [1, 1, 1, 1]} : vector<2x10x10x4xbf16> to vector<2x8x8x4xbf16>
    %18 = vector.shape_cast %17 : vector<2x8x8x4xbf16> to vector<128x4xbf16>
    %19 = tpu.concatenate %2, %4, %6, %8, %10, %12, %14, %16, %18 in 1 : vector<128x4xbf16>, vector<128x4xbf16>, vector<128x4xbf16>, vector<128x4xbf16>, vector<128x4xbf16>, vector<128x4xbf16>, vector<128x4xbf16>, vector<128x4xbf16>, vector<128x4xbf16> -> vector<128x36xbf16>
    %c0_3 = arith.constant 0 : index
    %c0_4 = arith.constant 0 : index
    %20 = vector.load %arg2[%c0_3, %c0_4] : memref<36x128xbf16, #tpu.memory_space<vmem>>, vector<36x128xbf16>
    %cst = arith.constant dense<0.000000e+00> : vector<128x128xf32>
    %21 = tpu.matmul %19, %20, %cst {dimension_numbers = #tpu.dot_dimension_numbers<[1], [0], [0], [1], [0, 0, 1, 1], [], []>} : vector<128x36xbf16>, vector<36x128xbf16>, vector<128x128xf32> -> vector<128x128xf32>
    %c0_5 = arith.constant 0 : index
    %c0_6 = arith.constant 0 : index
    %22 = vector.load %arg3[%c0_5, %c0_6] : memref<1x128xf32, #tpu.memory_space<vmem>>, vector<1x128xf32>
    %23 = vector.broadcast %22 : vector<1x128xf32> to vector<128x128xf32>
    %24 = arith.addf %21, %23 : vector<128x128xf32>
    %cst_7 = arith.constant 0.000000e+00 : f32
    %25 = vector.broadcast %cst_7 : f32 to vector<128x128xf32>
    %26 = arith.maximumf %24, %25 : vector<128x128xf32>
    %27 = vector.shape_cast %26 : vector<128x128xf32> to vector<2x64x128xf32>
    %28 = arith.truncf %27 : vector<2x64x128xf32> to vector<2x64x128xbf16>
    %c0_8 = arith.constant 0 : index
    %c0_9 = arith.constant 0 : index
    %c0_10 = arith.constant 0 : index
    %29 = vector.load %arg4[%c0_8, %c0_9, %c0_10] : memref<2x64x128xbf16, #tpu.memory_space<vmem>>, vector<2x64x128xbf16>
    tpu.vector_store %arg4[%c0_8, %c0_9, %c0_10], %28 {strides = array<i32>} : memref<2x64x128xbf16, #tpu.memory_space<vmem>>, vector<2x64x128xbf16>,
    %cst_11 = arith.constant dense<0.000000e+00> : vector<2x128xf32>
    %30 = vector.multi_reduction <add>, %27, %cst_11 [1] : vector<2x64x128xf32> to vector<2x128xf32>
    %31 = vector.shape_cast %30 : vector<2x128xf32> to vector<2x1x128xf32>
    %c0_12 = arith.constant 0 : index
    %c0_13 = arith.constant 0 : index
    %c0_14 = arith.constant 0 : index
    %32 = vector.load %arg5[%c0_12, %c0_13, %c0_14] : memref<2x1x128xf32, #tpu.memory_space<vmem>>, vector<2x1x128xf32>
    tpu.vector_store %arg5[%c0_12, %c0_13, %c0_14], %31 {strides = array<i32>} : memref<2x1x128xf32, #tpu.memory_space<vmem>>, vector<2x1x128xf32>,
    return
  }
  func.func @transform_0(%arg0: i32) -> (i32, i32, i32, i32) {
    %c0_i32 = arith.constant 0 : i32
    %c0_i32_0 = arith.constant 0 : i32
    %c0_i32_1 = arith.constant 0 : i32
    %c0_i32_2 = arith.constant 0 : i32
    return %arg0, %c0_i32, %c0_i32_0, %c0_i32_1 : i32, i32, i32, i32
  }
  func.func @transform_1(%arg0: i32) -> (i32, i32) {
    %c0_i32 = arith.constant 0 : i32
    %c0_i32_0 = arith.constant 0 : i32
    %c0_i32_1 = arith.constant 0 : i32
    return %c0_i32, %c0_i32_0 : i32, i32
  }
  func.func @transform_2(%arg0: i32) -> (i32, i32) {
    %c0_i32 = arith.constant 0 : i32
    %c0_i32_0 = arith.constant 0 : i32
    %c0_i32_1 = arith.constant 0 : i32
    return %c0_i32, %c0_i32_0 : i32, i32
  }
  func.func @transform_3(%arg0: i32) -> (i32, i32, i32) {
    %c0_i32 = arith.constant 0 : i32
    %c0_i32_0 = arith.constant 0 : i32
    %c0_i32_1 = arith.constant 0 : i32
    return %arg0, %c0_i32, %c0_i32_0 : i32, i32, i32
  }
  func.func @transform_4(%arg0: i32) -> (i32, i32, i32) {
    %c0_i32 = arith.constant 0 : i32
    %c0_i32_0 = arith.constant 0 : i32
    %c0_i32_1 = arith.constant 0 : i32
    return %arg0, %c0_i32, %c0_i32_0 : i32, i32, i32
  }
}

</mosaic_0001>

<llo_original>
// kernel: tpu_custom_call.1
$region0: #{tpu_custom_call.1}
  #allocation0 [shape = 'u32[]', space=smem, size = 0x4, offset = 0x4, fixed_abs, tag = 'smem constant byte address 0x4 - core index']
  #allocation1 [shape = 'u32[144,128]{1,0:T(1,128)}', space=vmem, size = 0x12000, scoped, tag = 'internal scratch']
  %s0 = inlined_call_operand.vmem [shape: bf16[2,10,10,4], index: 0, kind: input, shape index: {}]
  %s1 = inlined_call_operand.vmem [shape: bf16[36,128], index: 1, kind: input, shape index: {}]
  %s2 = inlined_call_operand.vmem [shape: f32[1,128], index: 2, kind: input, shape index: {}]
  %s3 = inlined_call_operand.hbm [shape: bf16[2,64,128], index: 3, kind: output, shape index: {0}]
  %s4 = inlined_call_operand.hbm [shape: f32[2,1,128], index: 4, kind: output, shape index: {1}]
  %5 = xla_tuple %s3, %s4
  %s6 = sld [smem:[#allocation0]]
  $region30: #{tpu_custom_call.1} parent=0
    _
  %s8 = ssub.s32 1, %s6
  %s9 = scalar_select 0, %s8, %s6
  $region1: #{tpu_custom_call.1} parent=0
    #allocation2 [shape = 'u8[32768]{0}', space=vmem, size = 0x8000, scoped, tag = 'output window, operand 0, single buffered']
    #allocation3 [shape = 's32[1]{0}', space=sflag, size = 0x4, scoped, tag = 'scoped memory for tpu_custom_call.1']
    #allocation4 [shape = 'u8[1024]{0}', space=vmem, size = 0x400, scoped, tag = 'output window, operand 1, single buffered']
    #allocation5 [shape = 's32[1]{0}', space=sflag, size = 0x4, scoped, tag = 'scoped memory for tpu_custom_call.1']
    %10 = vsyncpa [#allocation3], 0
    %11 = vsyncpa [#allocation5], 0
    // Predicated region
    $region2: #{tpu_custom_call.1} parent=1 // pred_check
      _
    $region3: #{tpu_custom_call.1} parent=1 // pred_check_branch
      %13 = sbr.rel (0) target = $region5
    $region4: #{tpu_custom_call.1} parent=1 // pred_region
      _
    $region5: #{tpu_custom_call.1} parent=1 // pred_fallthru
      _
    // Predicated region
    $region6: #{tpu_custom_call.1} parent=1 // pred_check
      _
    $region7: #{tpu_custom_call.1} parent=1 // pred_check_branch
      %15 = sbr.rel (0) target = $region9
    $region8: #{tpu_custom_call.1} parent=1 // pred_region
      _
    $region9: #{tpu_custom_call.1} parent=1 // pred_fallthru
      _
    // Predicated region
    $region10: #{tpu_custom_call.1} parent=1 // pred_check
      _
    $region11: #{tpu_custom_call.1} parent=1 // pred_check_branch
      %17 = sbr.rel (0) target = $region13
    $region12: #{tpu_custom_call.1} parent=1 // pred_region
      _
    $region13: #{tpu_custom_call.1} parent=1 // pred_fallthru
      _
    %v19 = vld [vmem:[%s0] sm:$0xf]
    %v20 = vld [vmem:[%s0 + $0x4] sm:$0x1]
    %v21 = vld [vmem:[%s0 + $0x8] sm:$0xf]
    %v22 = vld [vmem:[%s0 + $0xc] sm:$0x1]
    %v23 = vld [vmem:[%s0 + $0x10] sm:$0xf]
    %v24 = vld [vmem:[%s0 + $0x14] sm:$0x1]
    %v25 = vld [vmem:[%s0 + $0x18] sm:$0xf]
    %v26 = vld [vmem:[%s0 + $0x1c] sm:$0x1]
    %v27 = vld [vmem:[%s0 + $0x20] sm:$0xf]
    %v28 = vld [vmem:[%s0 + $0x24] sm:$0x1]
    %v29 = vld [vmem:[%s0 + $0x28] sm:$0xf]
    %v30 = vld [vmem:[%s0 + $0x2c] sm:$0x1]
    %v31 = vld [vmem:[%s0 + $0x30] sm:$0xf]
    %v32 = vld [vmem:[%s0 + $0x34] sm:$0x1]
    %v33 = vld [vmem:[%s0 + $0x38] sm:$0xf]
    %v34 = vld [vmem:[%s0 + $0x3c] sm:$0x1]
    %v35 = vld [vmem:[%s0 + $0x40] sm:$0xf]
    %v36 = vld [vmem:[%s0 + $0x44] sm:$0x1]
    %v37 = vld [vmem:[%s0 + $0x48] sm:$0xf]
    %v38 = vld [vmem:[%s0 + $0x4c] sm:$0x1]
    %v39 = vld [vmem:[%s0 + $0x50] sm:$0xf]
    %v40 = vld [vmem:[%s0 + $0x54] sm:$0x1]
    %v41 = vld [vmem:[%s0 + $0x58] sm:$0xf]
    %v42 = vld [vmem:[%s0 + $0x5c] sm:$0x1]
    %v43 = vld [vmem:[%s0 + $0x60] sm:$0xf]
    %v44 = vld [vmem:[%s0 + $0x64] sm:$0x1]
    %v45 = vld [vmem:[%s0 + $0x68] sm:$0xf]
    %v46 = vld [vmem:[%s0 + $0x6c] sm:$0x1]
    %v47 = vld [vmem:[%s0 + $0x70] sm:$0xf]
    %v48 = vld [vmem:[%s0 + $0x74] sm:$0x1]
    %v49 = vld [vmem:[%s0 + $0x78] sm:$0xf]
    %v50 = vld [vmem:[%s0 + $0x7c] sm:$0x1]
    %v51 = vld [vmem:[%s0 + $0x80] sm:$0xf]
    %v52 = vld [vmem:[%s0 + $0x84] sm:$0x1]
    %v53 = vld [vmem:[%s0 + $0x88] sm:$0xf]
    %v54 = vld [vmem:[%s0 + $0x8c] sm:$0x1]
    %v55 = vld [vmem:[%s0 + $0x90] sm:$0xf]
    %v56 = vld [vmem:[%s0 + $0x94] sm:$0x1]
    %v57 = vld [vmem:[%s0 + $0x98] sm:$0xf]
    %v58 = vld [vmem:[%s0 + $0x9c] sm:$0x1]
    %vm59 = vsmask.f32 3328
    %vm60 = vsmask.f32 7440
    %vm61 = vmor %vm59, %vm60
    %v63 = vshrl.u32 %v19, 16
    %v65 = vrot.slane %v63, 4
    %v66 = vshll.u32 %v19, 16
    %v68 = vrot.slane %v66, 5
    %v69 = vor.u32 %v65, %v68
    %v70 = vrot.slane %v69, 4
    %v72 = vshll.u32 %v20, 16
    %v74 = vrot.slane %v72, 5
    %v75 = vsel %vm61, %v70, %v74
    %v77 = vshrl.u32 %v21, 16
    %v79 = vrot.slane %v77, 4
    %v80 = vshll.u32 %v21, 16
    %v82 = vrot.slane %v80, 5
    %v83 = vor.u32 %v79, %v82
    %v84 = vrot.slane %v83, 4
    %v86 = vshll.u32 %v22, 16
    %v88 = vrot.slane %v86, 5
    %v89 = vsel %vm61, %v84, %v88
    %v91 = vshrl.u32 %v23, 16
    %v93 = vrot.slane %v91, 4
    %v94 = vshll.u32 %v23, 16
    %v96 = vrot.slane %v94, 5
    %v97 = vor.u32 %v93, %v96
    %v98 = vrot.slane %v97, 4
    %v100 = vshll.u32 %v24, 16
    %v102 = vrot.slane %v100, 5
    %v103 = vsel %vm61, %v98, %v102
    %v105 = vshrl.u32 %v25, 16
    %v107 = vrot.slane %v105, 4
    %v108 = vshll.u32 %v25, 16
    %v110 = vrot.slane %v108, 5
    %v111 = vor.u32 %v107, %v110
    %v112 = vrot.slane %v111, 4
    %v114 = vshll.u32 %v26, 16
    %v116 = vrot.slane %v114, 5
    %v117 = vsel %vm61, %v112, %v116
    %v119 = vshrl.u32 %v27, 16
    %v121 = vrot.slane %v119, 4
    %v122 = vshll.u32 %v27, 16
    %v124 = vrot.slane %v122, 5
    %v125 = vor.u32 %v121, %v124
    %v126 = vrot.slane %v125, 4
    %v128 = vshll.u32 %v28, 16
    %v130 = vrot.slane %v128, 5
    %v131 = vsel %vm61, %v126, %v130
    %v133 = vshrl.u32 %v29, 16
    %v135 = vrot.slane %v133, 4
    %v136 = vshll.u32 %v29, 16
    %v138 = vrot.slane %v136, 5
    %v139 = vor.u32 %v135, %v138
    %v140 = vrot.slane %v139, 4
    %v142 = vshll.u32 %v30, 16
    %v144 = vrot.slane %v142, 5
    %v145 = vsel %vm61, %v140, %v144
    %v147 = vshrl.u32 %v31, 16
    %v149 = vrot.slane %v147, 4
    %v150 = vshll.u32 %v31, 16
    %v152 = vrot.slane %v150, 5
    %v153 = vor.u32 %v149, %v152
    %v154 = vrot.slane %v153, 4
    %v156 = vshll.u32 %v32, 16
    %v158 = vrot.slane %v156, 5
    %v159 = vsel %vm61, %v154, %v158
    %v161 = vshrl.u32 %v33, 16
    %v163 = vrot.slane %v161, 4
    %v164 = vshll.u32 %v33, 16
    %v166 = vrot.slane %v164, 5
    %v167 = vor.u32 %v163, %v166
    %v168 = vrot.slane %v167, 4
    %v170 = vshll.u32 %v34, 16
    %v172 = vrot.slane %v170, 5
    %v173 = vsel %vm61, %v168, %v172
    %v175 = vshrl.u32 %v39, 16
    %v177 = vrot.slane %v175, 4
    %v178 = vshll.u32 %v39, 16
    %v180 = vrot.slane %v178, 5
    %v181 = vor.u32 %v177, %v180
    %v182 = vrot.slane %v181, 4
    %v184 = vshll.u32 %v40, 16
    %v186 = vrot.slane %v184, 5
    %v187 = vsel %vm61, %v182, %v186
    %v189 = vshrl.u32 %v41, 16
    %v191 = vrot.slane %v189, 4
    %v192 = vshll.u32 %v41, 16
    %v194 = vrot.slane %v192, 5
    %v195 = vor.u32 %v191, %v194
    %v196 = vrot.slane %v195, 4
    %v198 = vshll.u32 %v42, 16
    %v200 = vrot.slane %v198, 5
    %v201 = vsel %vm61, %v196, %v200
    %v203 = vshrl.u32 %v43, 16
    %v205 = vrot.slane %v203, 4
    %v206 = vshll.u32 %v43, 16
    %v208 = vrot.slane %v206, 5
    %v209 = vor.u32 %v205, %v208
    %v210 = vrot.slane %v209, 4
    %v212 = vshll.u32 %v44, 16
    %v214 = vrot.slane %v212, 5
    %v215 = vsel %vm61, %v210, %v214
    %v217 = vshrl.u32 %v45, 16
    %v219 = vrot.slane %v217, 4
    %v220 = vshll.u32 %v45, 16
    %v222 = vrot.slane %v220, 5
    %v223 = vor.u32 %v219, %v222
    %v224 = vrot.slane %v223, 4
    %v226 = vshll.u32 %v46, 16
    %v228 = vrot.slane %v226, 5
    %v229 = vsel %vm61, %v224, %v228
    %v231 = vshrl.u32 %v47, 16
    %v233 = vrot.slane %v231, 4
    %v234 = vshll.u32 %v47, 16
    %v236 = vrot.slane %v234, 5
    %v237 = vor.u32 %v233, %v236
    %v238 = vrot.slane %v237, 4
    %v240 = vshll.u32 %v48, 16
    %v242 = vrot.slane %v240, 5
    %v243 = vsel %vm61, %v238, %v242
    %v245 = vshrl.u32 %v49, 16
    %v247 = vrot.slane %v245, 4
    %v248 = vshll.u32 %v49, 16
    %v250 = vrot.slane %v248, 5
    %v251 = vor.u32 %v247, %v250
    %v252 = vrot.slane %v251, 4
    %v254 = vshll.u32 %v50, 16
    %v256 = vrot.slane %v254, 5
    %v257 = vsel %vm61, %v252, %v256
    %v259 = vshrl.u32 %v51, 16
    %v261 = vrot.slane %v259, 4
    %v262 = vshll.u32 %v51, 16
    %v264 = vrot.slane %v262, 5
    %v265 = vor.u32 %v261, %v264
    %v266 = vrot.slane %v265, 4
    %v268 = vshll.u32 %v52, 16
    %v270 = vrot.slane %v268, 5
    %v271 = vsel %vm61, %v266, %v270
    %v273 = vshrl.u32 %v53, 16
    %v275 = vrot.slane %v273, 4
    %v276 = vshll.u32 %v53, 16
    %v278 = vrot.slane %v276, 5
    %v279 = vor.u32 %v275, %v278
    %v280 = vrot.slane %v279, 4
    %v282 = vshll.u32 %v54, 16
    %v284 = vrot.slane %v282, 5
    %v285 = vsel %vm61, %v280, %v284
    %vm318 = vcmask 1042432
    %vm319 = vcmask 1046532
    %vm320 = vmor %vm318, %vm319
    %v321 = vrot.slane %v19, 5
    %v322 = vrot.slane %v321, 4
    %v323 = vrot.slane %v20, 5
    %v324 = vsel %vm320, %v322, %v323
    %v325 = vrot.slane %v21, 5
    %v326 = vrot.slane %v325, 4
    %v327 = vrot.slane %v22, 5
    %v328 = vsel %vm320, %v326, %v327
    %v329 = vrot.slane %v23, 5
    %v330 = vrot.slane %v329, 4
    %v331 = vrot.slane %v24, 5
    %v332 = vsel %vm320, %v330, %v331
    %v333 = vrot.slane %v25, 5
    %v334 = vrot.slane %v333, 4
    %v335 = vrot.slane %v26, 5
    %v336 = vsel %vm320, %v334, %v335
    %v337 = vrot.slane %v27, 5
    %v338 = vrot.slane %v337, 4
    %v339 = vrot.slane %v28, 5
    %v340 = vsel %vm320, %v338, %v339
    %v341 = vrot.slane %v29, 5
    %v342 = vrot.slane %v341, 4
    %v343 = vrot.slane %v30, 5
    %v344 = vsel %vm320, %v342, %v343
    %v345 = vrot.slane %v31, 5
    %v346 = vrot.slane %v345, 4
    %v347 = vrot.slane %v32, 5
    %v348 = vsel %vm320, %v346, %v347
    %v349 = vrot.slane %v33, 5
    %v350 = vrot.slane %v349, 4
    %v351 = vrot.slane %v34, 5
    %v352 = vsel %vm320, %v350, %v351
    %v353 = vrot.slane %v39, 5
    %v354 = vrot.slane %v353, 4
    %v355 = vrot.slane %v40, 5
    %v356 = vsel %vm320, %v354, %v355
    %v357 = vrot.slane %v41, 5
    %v358 = vrot.slane %v357, 4
    %v359 = vrot.slane %v42, 5
    %v360 = vsel %vm320, %v358, %v359
    %v361 = vrot.slane %v43, 5
    %v362 = vrot.slane %v361, 4
    %v363 = vrot.slane %v44, 5
    %v364 = vsel %vm320, %v362, %v363
    %v365 = vrot.slane %v45, 5
    %v366 = vrot.slane %v365, 4
    %v367 = vrot.slane %v46, 5
    %v368 = vsel %vm320, %v366, %v367
    %v369 = vrot.slane %v47, 5
    %v370 = vrot.slane %v369, 4
    %v371 = vrot.slane %v48, 5
    %v372 = vsel %vm320, %v370, %v371
    %v373 = vrot.slane %v49, 5
    %v374 = vrot.slane %v373, 4
    %v375 = vrot.slane %v50, 5
    %v376 = vsel %vm320, %v374, %v375
    %v377 = vrot.slane %v51, 5
    %v378 = vrot.slane %v377, 4
    %v379 = vrot.slane %v52, 5
    %v380 = vsel %vm320, %v378, %v379
    %v381 = vrot.slane %v53, 5
    %v382 = vrot.slane %v381, 4
    %v383 = vrot.slane %v54, 5
    %v384 = vsel %vm320, %v382, %v383
    %v386 = vshrl.u32 %v35, 16
    %v388 = vrot.slane %v386, 4
    %v389 = vshll.u32 %v35, 16
    %v391 = vrot.slane %v389, 5
    %v392 = vor.u32 %v388, %v391
    %v393 = vrot.slane %v392, 4
    %v395 = vshll.u32 %v36, 16
    %v397 = vrot.slane %v395, 5
    %v398 = vsel %vm61, %v393, %v397
    %v400 = vshrl.u32 %v55, 16
    %v402 = vrot.slane %v400, 4
    %v403 = vshll.u32 %v55, 16
    %v405 = vrot.slane %v403, 5
    %v406 = vor.u32 %v402, %v405
    %v407 = vrot.slane %v406, 4
    %v409 = vshll.u32 %v56, 16
    %v411 = vrot.slane %v409, 5
    %v412 = vsel %vm61, %v407, %v411
    %v417 = vrot.slane %v35, 5
    %v418 = vrot.slane %v417, 4
    %v419 = vrot.slane %v36, 5
    %v420 = vsel %vm320, %v418, %v419
    %v421 = vrot.slane %v55, 5
    %v422 = vrot.slane %v421, 4
    %v423 = vrot.slane %v56, 5
    %v424 = vsel %vm320, %v422, %v423
    %v426 = vshrl.u32 %v37, 16
    %v428 = vrot.slane %v426, 4
    %v429 = vshll.u32 %v37, 16
    %v431 = vrot.slane %v429, 5
    %v432 = vor.u32 %v428, %v431
    %v433 = vrot.slane %v432, 4
    %v435 = vshll.u32 %v38, 16
    %v437 = vrot.slane %v435, 5
    %v438 = vsel %vm61, %v433, %v437
    %v440 = vshrl.u32 %v57, 16
    %v442 = vrot.slane %v440, 4
    %v443 = vshll.u32 %v57, 16
    %v445 = vrot.slane %v443, 5
    %v446 = vor.u32 %v442, %v445
    %v447 = vrot.slane %v446, 4
    %v449 = vshll.u32 %v58, 16
    %v451 = vrot.slane %v449, 5
    %v452 = vsel %vm61, %v447, %v451
    %v457 = vrot.slane %v37, 5
    %v458 = vrot.slane %v457, 4
    %v459 = vrot.slane %v38, 5
    %v460 = vsel %vm320, %v458, %v459
    %v461 = vrot.slane %v57, 5
    %v462 = vrot.slane %v461, 4
    %v463 = vrot.slane %v58, 5
    %v464 = vsel %vm320, %v462, %v463
    %v465 = vunpack.c.l.b16 %v19
    %v466 = vunpack.c.l.b16 %v21
    %v467 = vunpack.c.l.b16 %v23
    %v468 = vunpack.c.l.b16 %v25
    %v469 = vunpack.c.l.b16 %v27
    %v470 = vunpack.c.l.b16 %v29
    %v471 = vunpack.c.l.b16 %v31
    %v472 = vunpack.c.l.b16 %v33
    %v473 = vunpack.c.l.b16 %v39
    %v474 = vunpack.c.l.b16 %v41
    %v475 = vunpack.c.l.b16 %v43
    %v476 = vunpack.c.l.b16 %v45
    %v477 = vunpack.c.l.b16 %v47
    %v478 = vunpack.c.l.b16 %v49
    %v479 = vunpack.c.l.b16 %v51
    %v480 = vunpack.c.l.b16 %v53
    %v481 = vpack.c.b16 %v466, %v465
    %v482 = vpack.c.b16 %v468, %v467
    %v483 = vpack.c.b16 %v470, %v469
    %v484 = vpack.c.b16 %v472, %v471
    %v485 = vpack.c.b16 %v474, %v473
    %v486 = vpack.c.b16 %v476, %v475
    %v487 = vpack.c.b16 %v478, %v477
    %v488 = vpack.c.b16 %v480, %v479
    %v489 = vunpack.c.l.b16 %v75
    %v490 = vunpack.c.l.b16 %v89
    %v491 = vunpack.c.l.b16 %v103
    %v492 = vunpack.c.l.b16 %v117
    %v493 = vunpack.c.l.b16 %v131
    %v494 = vunpack.c.l.b16 %v145
    %v495 = vunpack.c.l.b16 %v159
    %v496 = vunpack.c.l.b16 %v173
    %v497 = vunpack.c.l.b16 %v187
    %v498 = vunpack.c.l.b16 %v201
    %v499 = vunpack.c.l.b16 %v215
    %v500 = vunpack.c.l.b16 %v229
    %v501 = vunpack.c.l.b16 %v243
    %v502 = vunpack.c.l.b16 %v257
    %v503 = vunpack.c.l.b16 %v271
    %v504 = vunpack.c.l.b16 %v285
    %v505 = vpack.c.b16 %v490, %v489
    %v506 = vpack.c.b16 %v492, %v491
    %v507 = vpack.c.b16 %v494, %v493
    %v508 = vpack.c.b16 %v496, %v495
    %v509 = vpack.c.b16 %v498, %v497
    %v510 = vpack.c.b16 %v500, %v499
    %v511 = vpack.c.b16 %v502, %v501
    %v512 = vpack.c.b16 %v504, %v503
    %513 = vrot.lane.b32.xlu0 %v505, 4
    %v514 = vpop.permute.xlu0 %513
    %515 = vrot.lane.b32.xlu0 %v506, 4
    %v516 = vpop.permute.xlu0 %515
    %517 = vrot.lane.b32.xlu0 %v507, 4
    %v518 = vpop.permute.xlu0 %517
    %519 = vrot.lane.b32.xlu0 %v508, 4
    %v520 = vpop.permute.xlu0 %519
    %521 = vrot.lane.b32.xlu0 %v509, 4
    %v522 = vpop.permute.xlu0 %521
    %523 = vrot.lane.b32.xlu0 %v510, 4
    %v524 = vpop.permute.xlu0 %523
    %525 = vrot.lane.b32.xlu0 %v511, 4
    %v526 = vpop.permute.xlu0 %525
    %527 = vrot.lane.b32.xlu0 %v512, 4
    %v528 = vpop.permute.xlu0 %527
    %v529 = vunpack.c.l.b16 %v324
    %v530 = vunpack.c.l.b16 %v328
    %v531 = vunpack.c.l.b16 %v332
    %v532 = vunpack.c.l.b16 %v336
    %v533 = vunpack.c.l.b16 %v340
    %v534 = vunpack.c.l.b16 %v344
    %v535 = vunpack.c.l.b16 %v348
    %v536 = vunpack.c.l.b16 %v352
    %v537 = vunpack.c.l.b16 %v356
    %v538 = vunpack.c.l.b16 %v360
    %v539 = vunpack.c.l.b16 %v364
    %v540 = vunpack.c.l.b16 %v368
    %v541 = vunpack.c.l.b16 %v372
    %v542 = vunpack.c.l.b16 %v376
    %v543 = vunpack.c.l.b16 %v380
    %v544 = vunpack.c.l.b16 %v384
    %v545 = vpack.c.b16 %v530, %v529
    %v546 = vpack.c.b16 %v532, %v531
    %v547 = vpack.c.b16 %v534, %v533
    %v548 = vpack.c.b16 %v536, %v535
    %v549 = vpack.c.b16 %v538, %v537
    %v550 = vpack.c.b16 %v540, %v539
    %v551 = vpack.c.b16 %v542, %v541
    %v552 = vpack.c.b16 %v544, %v543
    %553 = vrot.lane.b32.xlu0 %v545, 8
    %v554 = vpop.permute.xlu0 %553
    %555 = vrot.lane.b32.xlu0 %v546, 8
    %v556 = vpop.permute.xlu0 %555
    %557 = vrot.lane.b32.xlu0 %v547, 8
    %v558 = vpop.permute.xlu0 %557
    %559 = vrot.lane.b32.xlu0 %v548, 8
    %v560 = vpop.permute.xlu0 %559
    %561 = vrot.lane.b32.xlu0 %v549, 8
    %v562 = vpop.permute.xlu0 %561
    %563 = vrot.lane.b32.xlu0 %v550, 8
    %v564 = vpop.permute.xlu0 %563
    %565 = vrot.lane.b32.xlu0 %v551, 8
    %v566 = vpop.permute.xlu0 %565
    %567 = vrot.lane.b32.xlu0 %v552, 8
    %v568 = vpop.permute.xlu0 %567
    %v569 = vunpack.c.l.b16 %v35
    %v570 = vunpack.c.l.b16 %v55
    %v571 = vpack.c.b16 %v467, %v466
    %v572 = vpack.c.b16 %v469, %v468
    %v573 = vpack.c.b16 %v471, %v470
    %v574 = vpack.c.b16 %v569, %v472
    %v575 = vpack.c.b16 %v475, %v474
    %v576 = vpack.c.b16 %v477, %v476
    %v577 = vpack.c.b16 %v479, %v478
    %v578 = vpack.c.b16 %v570, %v480
    %579 = vrot.lane.b32.xlu0 %v571, 12
    %v580 = vpop.permute.xlu0 %579
    %581 = vrot.lane.b32.xlu0 %v572, 12
    %v582 = vpop.permute.xlu0 %581
    %583 = vrot.lane.b32.xlu0 %v573, 12
    %v584 = vpop.permute.xlu0 %583
    %585 = vrot.lane.b32.xlu0 %v574, 12
    %v586 = vpop.permute.xlu0 %585
    %587 = vrot.lane.b32.xlu0 %v575, 12
    %v588 = vpop.permute.xlu0 %587
    %589 = vrot.lane.b32.xlu0 %v576, 12
    %v590 = vpop.permute.xlu0 %589
    %591 = vrot.lane.b32.xlu0 %v577, 12
    %v592 = vpop.permute.xlu0 %591
    %593 = vrot.lane.b32.xlu0 %v578, 12
    %v594 = vpop.permute.xlu0 %593
    %v595 = vunpack.c.l.b16 %v398
    %v596 = vunpack.c.l.b16 %v412
    %v597 = vpack.c.b16 %v491, %v490
    %v598 = vpack.c.b16 %v493, %v492
    %v599 = vpack.c.b16 %v495, %v494
    %v600 = vpack.c.b16 %v595, %v496
    %v601 = vpack.c.b16 %v499, %v498
    %v602 = vpack.c.b16 %v501, %v500
    %v603 = vpack.c.b16 %v503, %v502
    %v604 = vpack.c.b16 %v596, %v504
    %605 = vrot.lane.b32.xlu0 %v597, 16
    %v606 = vpop.permute.xlu0 %605
    %607 = vrot.lane.b32.xlu0 %v598, 16
    %v608 = vpop.permute.xlu0 %607
    %609 = vrot.lane.b32.xlu0 %v599, 16
    %v610 = vpop.permute.xlu0 %609
    %611 = vrot.lane.b32.xlu0 %v600, 16
    %v612 = vpop.permute.xlu0 %611
    %613 = vrot.lane.b32.xlu0 %v601, 16
    %v614 = vpop.permute.xlu0 %613
    %615 = vrot.lane.b32.xlu0 %v602, 16
    %v616 = vpop.permute.xlu0 %615
    %617 = vrot.lane.b32.xlu0 %v603, 16
    %v618 = vpop.permute.xlu0 %617
    %619 = vrot.lane.b32.xlu0 %v604, 16
    %v620 = vpop.permute.xlu0 %619
    %v621 = vunpack.c.l.b16 %v420
    %v622 = vunpack.c.l.b16 %v424
    %v623 = vpack.c.b16 %v531, %v530
    %v624 = vpack.c.b16 %v533, %v532
    %v625 = vpack.c.b16 %v535, %v534
    %v626 = vpack.c.b16 %v621, %v536
    %v627 = vpack.c.b16 %v539, %v538
    %v628 = vpack.c.b16 %v541, %v540
    %v629 = vpack.c.b16 %v543, %v542
    %v630 = vpack.c.b16 %v622, %v544
    %631 = vrot.lane.b32.xlu0 %v623, 20
    %v632 = vpop.permute.xlu0 %631
    %633 = vrot.lane.b32.xlu0 %v624, 20
    %v634 = vpop.permute.xlu0 %633
    %635 = vrot.lane.b32.xlu0 %v625, 20
    %v636 = vpop.permute.xlu0 %635
    %637 = vrot.lane.b32.xlu0 %v626, 20
    %v638 = vpop.permute.xlu0 %637
    %639 = vrot.lane.b32.xlu0 %v627, 20
    %v640 = vpop.permute.xlu0 %639
    %641 = vrot.lane.b32.xlu0 %v628, 20
    %v642 = vpop.permute.xlu0 %641
    %643 = vrot.lane.b32.xlu0 %v629, 20
    %v644 = vpop.permute.xlu0 %643
    %645 = vrot.lane.b32.xlu0 %v630, 20
    %v646 = vpop.permute.xlu0 %645
    %v647 = vunpack.c.l.b16 %v37
    %v648 = vunpack.c.l.b16 %v57
    %v649 = vpack.c.b16 %v647, %v569
    %v650 = vpack.c.b16 %v648, %v570
    %651 = vrot.lane.b32.xlu0 %v482, 24
    %v652 = vpop.permute.xlu0 %651
    %653 = vrot.lane.b32.xlu0 %v483, 24
    %v654 = vpop.permute.xlu0 %653
    %655 = vrot.lane.b32.xlu0 %v484, 24
    %v656 = vpop.permute.xlu0 %655
    %657 = vrot.lane.b32.xlu0 %v649, 24
    %v658 = vpop.permute.xlu0 %657
    %659 = vrot.lane.b32.xlu0 %v486, 24
    %v660 = vpop.permute.xlu0 %659
    %661 = vrot.lane.b32.xlu0 %v487, 24
    %v662 = vpop.permute.xlu0 %661
    %663 = vrot.lane.b32.xlu0 %v488, 24
    %v664 = vpop.permute.xlu0 %663
    %665 = vrot.lane.b32.xlu0 %v650, 24
    %v666 = vpop.permute.xlu0 %665
    %v667 = vunpack.c.l.b16 %v438
    %v668 = vunpack.c.l.b16 %v452
    %v669 = vpack.c.b16 %v667, %v595
    %v670 = vpack.c.b16 %v668, %v596
    %671 = vrot.lane.b32.xlu0 %v506, 28
    %v672 = vpop.permute.xlu0 %671
    %673 = vrot.lane.b32.xlu0 %v507, 28
    %v674 = vpop.permute.xlu0 %673
    %675 = vrot.lane.b32.xlu0 %v508, 28
    %v676 = vpop.permute.xlu0 %675
    %677 = vrot.lane.b32.xlu0 %v669, 28
    %v678 = vpop.permute.xlu0 %677
    %679 = vrot.lane.b32.xlu0 %v510, 28
    %v680 = vpop.permute.xlu0 %679
    %681 = vrot.lane.b32.xlu0 %v511, 28
    %v682 = vpop.permute.xlu0 %681
    %683 = vrot.lane.b32.xlu0 %v512, 28
    %v684 = vpop.permute.xlu0 %683
    %685 = vrot.lane.b32.xlu0 %v670, 28
    %v686 = vpop.permute.xlu0 %685
    %v687 = vunpack.c.l.b16 %v460
    %v688 = vunpack.c.l.b16 %v464
    %v689 = vpack.c.b16 %v687, %v621
    %v690 = vpack.c.b16 %v688, %v622
    %691 = vrot.lane.b32.xlu0 %v546, 32
    %v692 = vpop.permute.xlu0 %691
    %693 = vrot.lane.b32.xlu0 %v547, 32
    %v694 = vpop.permute.xlu0 %693
    %695 = vrot.lane.b32.xlu0 %v548, 32
    %v696 = vpop.permute.xlu0 %695
    %697 = vrot.lane.b32.xlu0 %v689, 32
    %v698 = vpop.permute.xlu0 %697
    %699 = vrot.lane.b32.xlu0 %v550, 32
    %v700 = vpop.permute.xlu0 %699
    %701 = vrot.lane.b32.xlu0 %v551, 32
    %v702 = vpop.permute.xlu0 %701
    %703 = vrot.lane.b32.xlu0 %v552, 32
    %v704 = vpop.permute.xlu0 %703
    %705 = vrot.lane.b32.xlu0 %v690, 32
    %v706 = vpop.permute.xlu0 %705
    %vm707 = vcmask 31744
    %v710 = vsel %vm707, %v481, %v514
    %v713 = vsel %vm707, %v482, %v516
    %v716 = vsel %vm707, %v483, %v518
    %v719 = vsel %vm707, %v484, %v520
    %v722 = vsel %vm707, %v485, %v522
    %v725 = vsel %vm707, %v486, %v524
    %v728 = vsel %vm707, %v487, %v526
    %v731 = vsel %vm707, %v488, %v528
    %vm732 = vcmask 64512
    %v734 = vsel %vm732, %v710, %v554
    %v736 = vsel %vm732, %v713, %v556
    %v738 = vsel %vm732, %v716, %v558
    %v740 = vsel %vm732, %v719, %v560
    %v742 = vsel %vm732, %v722, %v562
    %v744 = vsel %vm732, %v725, %v564
    %v746 = vsel %vm732, %v728, %v566
    %v748 = vsel %vm732, %v731, %v568
    %vm749 = vcmask 97280
    %v751 = vsel %vm749, %v734, %v580
    %v753 = vsel %vm749, %v736, %v582
    %v755 = vsel %vm749, %v738, %v584
    %v757 = vsel %vm749, %v740, %v586
    %v759 = vsel %vm749, %v742, %v588
    %v761 = vsel %vm749, %v744, %v590
    %v763 = vsel %vm749, %v746, %v592
    %v765 = vsel %vm749, %v748, %v594
    %vm766 = vcmask 130048
    %v768 = vsel %vm766, %v751, %v606
    %v770 = vsel %vm766, %v753, %v608
    %v772 = vsel %vm766, %v755, %v610
    %v774 = vsel %vm766, %v757, %v612
    %v776 = vsel %vm766, %v759, %v614
    %v778 = vsel %vm766, %v761, %v616
    %v780 = vsel %vm766, %v763, %v618
    %v782 = vsel %vm766, %v765, %v620
    %vm783 = vcmask 162816
    %v785 = vsel %vm783, %v768, %v632
    %v787 = vsel %vm783, %v770, %v634
    %v789 = vsel %vm783, %v772, %v636
    %v791 = vsel %vm783, %v774, %v638
    %v793 = vsel %vm783, %v776, %v640
    %v795 = vsel %vm783, %v778, %v642
    %v797 = vsel %vm783, %v780, %v644
    %v799 = vsel %vm783, %v782, %v646
    %vm800 = vcmask 195584
    %v802 = vsel %vm800, %v785, %v652
    %v804 = vsel %vm800, %v787, %v654
    %v806 = vsel %vm800, %v789, %v656
    %v808 = vsel %vm800, %v791, %v658
    %v810 = vsel %vm800, %v793, %v660
    %v812 = vsel %vm800, %v795, %v662
    %v814 = vsel %vm800, %v797, %v664
    %v816 = vsel %vm800, %v799, %v666
    %vm817 = vcmask 228352
    %v819 = vsel %vm817, %v802, %v672
    %v821 = vsel %vm817, %v804, %v674
    %v823 = vsel %vm817, %v806, %v676
    %v825 = vsel %vm817, %v808, %v678
    %v827 = vsel %vm817, %v810, %v680
    %v829 = vsel %vm817, %v812, %v682
    %v831 = vsel %vm817, %v814, %v684
    %v833 = vsel %vm817, %v816, %v686
    %vm834 = vcmask 261120
    %v836 = vsel %vm834, %v819, %v692
    %v838 = vsel %vm834, %v821, %v694
    %v840 = vsel %vm834, %v823, %v696
    %v842 = vsel %vm834, %v825, %v698
    %v844 = vsel %vm834, %v827, %v700
    %v846 = vsel %vm834, %v829, %v702
    %v848 = vsel %vm834, %v831, %v704
    %v850 = vsel %vm834, %v833, %v706
    %v851 = vld [vmem:[%s1] sm:$0xf]
    %v852 = vld [vmem:[%s1 + $0x4] sm:$0xf]
    %v853 = vld [vmem:[%s1 + $0x8] sm:$0xf]
    %v854 = vld [vmem:[%s1 + $0xc] sm:$0xf]
    %v855 = vld [vmem:[%s1 + $0x10] sm:$0x3]
    %v856 = vld [vmem:[%s2] sm:$0x1]
    %v858 = vlaneseq
    %v859 = vshrl.u32 %v858, 7
    %v860 = vsub.s32 0, %v859
    %v861 = vrot.slane %v856, %v860
    %v868 = vunpack.c.l.b16 %v851
    %v869 = vunpack.c.l.b16 %v852
    %v870 = vunpack.c.l.b16 %v853
    %v871 = vunpack.c.l.b16 %v854
    %v872 = vunpack.c.l.b16 %v855
    %v873 = vpack.c.b16 %v869, %v868
    %v874 = vpack.c.b16 %v871, %v870
    %v875 = vpack.c.b16 %v872, %v872
    %vm878 = vcmask 293888
    %v879 = vsel %vm878, %v836, 0
    %v881 = vsel %vm878, %v838, 0
    %v883 = vsel %vm878, %v840, 0
    %v885 = vsel %vm878, %v842, 0
    %v887 = vsel %vm878, %v844, 0
    %v889 = vsel %vm878, %v846, 0
    %v891 = vsel %vm878, %v848, 0
    %v893 = vsel %vm878, %v850, 0
    %vm895 = vcmask 1041408
    %v897 = vsel %vm895, %v875, 0
    %899 = vmatprep.subr.bf16.mxu0 0
    %900 = vmatpush1.bf16.msra.mxu0 %v873
    %901 = vmatprep.subr.bf16.mxu0 0
    %902 = vmatpush1.bf16.msra.mxu0 %v874
    %903 = vmatprep.subr.bf16.mxu0 0
    %904 = vmatpush1.bf16.msra.mxu0 %v897
    %905 = vmatprep.subr.bf16.mxu0 0
    %906 = vmatpush1.bf16.msra.mxu0 0
    %907 = vmatprep.subr.bf16.mxu0 0
    %908 = vmatpush1.bf16.msra.mxu0 0
    %909 = vmatprep.subr.bf16.mxu0 0
    %910 = vmatpush1.bf16.msra.mxu0 0
    %911 = vmatprep.subr.bf16.mxu0 0
    %912 = vmatpush1.bf16.msra.mxu0 0
    %913 = vmatprep.subr.bf16.mxu0 0
    %914 = vmatpush1.bf16.msra.mxu0 0
    %915 = vmatprep.subr.bf16.mxu0 0
    %916 = vmatpush1.bf16.msra.mxu0 0
    %917 = vmatprep.subr.bf16.mxu0 0
    %918 = vmatpush1.bf16.msra.mxu0 0
    %919 = vmatprep.subr.bf16.mxu0 0
    %920 = vmatpush1.bf16.msra.mxu0 0
    %921 = vmatprep.subr.bf16.mxu0 0
    %922 = vmatpush1.bf16.msra.mxu0 0
    %923 = vmatprep.subr.bf16.mxu0 0
    %924 = vmatpush1.bf16.msra.mxu0 0
    %925 = vmatprep.subr.bf16.mxu0 0
    %926 = vmatpush1.bf16.msra.mxu0 0
    %927 = vmatprep.subr.bf16.mxu0 0
    %928 = vmatpush1.bf16.msra.mxu0 0
    %929 = vmatprep.subr.bf16.mxu0 0
    %930 = vmatpush1.bf16.msra.mxu0 0
    %931 = vmatprep.mubr.bf16.mxu0 0
    %932 = vmatmul.mubr.bf16.gmra.mrb[0].mxu0 %v879
    %v933 = vpop.f32.mrb[0].mxu0
    %v934 = vadd.f32 %v861, %v933
    %v935 = vpop.f32.mrb[0].mxu0
    %v936 = vpop.f32.mrb[0].mxu0
    %v937 = vadd.f32 %v861, %v936
    %v938 = vpop.f32.mrb[0].mxu0
    %939 = vmatprep.mubr.bf16.mxu0 0
    %940 = vmatmul.mubr.bf16.gmra.mrb[0].mxu0 %v881
    %v941 = vpop.f32.mrb[0].mxu0
    %v942 = vadd.f32 %v861, %v941
    %v943 = vpop.f32.mrb[0].mxu0
    %v944 = vpop.f32.mrb[0].mxu0
    %v945 = vadd.f32 %v861, %v944
    %v946 = vpop.f32.mrb[0].mxu0
    %947 = vmatprep.mubr.bf16.mxu0 0
    %948 = vmatmul.mubr.bf16.gmra.mrb[0].mxu0 %v883
    %v949 = vpop.f32.mrb[0].mxu0
    %v950 = vadd.f32 %v861, %v949
    %v951 = vpop.f32.mrb[0].mxu0
    %v952 = vpop.f32.mrb[0].mxu0
    %v953 = vadd.f32 %v861, %v952
    %v954 = vpop.f32.mrb[0].mxu0
    %955 = vmatprep.mubr.bf16.mxu0 0
    %956 = vmatmul.mubr.bf16.gmra.mrb[0].mxu0 %v885
    %v957 = vpop.f32.mrb[0].mxu0
    %v958 = vadd.f32 %v861, %v957
    %v959 = vpop.f32.mrb[0].mxu0
    %v960 = vpop.f32.mrb[0].mxu0
    %v961 = vadd.f32 %v861, %v960
    %v962 = vpop.f32.mrb[0].mxu0
    %963 = vmatprep.mubr.bf16.mxu0 0
    %964 = vmatmul.mubr.bf16.gmra.mrb[0].mxu0 %v887
    %v965 = vpop.f32.mrb[0].mxu0
    %v966 = vadd.f32 %v861, %v965
    %v967 = vpop.f32.mrb[0].mxu0
    %v968 = vpop.f32.mrb[0].mxu0
    %v969 = vadd.f32 %v861, %v968
    %v970 = vpop.f32.mrb[0].mxu0
    %971 = vmatprep.mubr.bf16.mxu0 0
    %972 = vmatmul.mubr.bf16.gmra.mrb[0].mxu0 %v889
    %v973 = vpop.f32.mrb[0].mxu0
    %v974 = vadd.f32 %v861, %v973
    %v975 = vpop.f32.mrb[0].mxu0
    %v976 = vpop.f32.mrb[0].mxu0
    %v977 = vadd.f32 %v861, %v976
    %v978 = vpop.f32.mrb[0].mxu0
    %979 = vmatprep.mubr.bf16.mxu0 0
    %980 = vmatmul.mubr.bf16.gmra.mrb[0].mxu0 %v891
    %v981 = vpop.f32.mrb[0].mxu0
    %v982 = vadd.f32 %v861, %v981
    %v983 = vpop.f32.mrb[0].mxu0
    %v984 = vpop.f32.mrb[0].mxu0
    %v985 = vadd.f32 %v861, %v984
    %v986 = vpop.f32.mrb[0].mxu0
    %987 = vmatprep.mubr.bf16.mxu0 0
    %988 = vmatmul.mubr.bf16.gmra.mrb[0].mxu0 %v893
    %v989 = vpop.f32.mrb[0].mxu0
    %v990 = vadd.f32 %v861, %v989
    %v991 = vpop.f32.mrb[0].mxu0
    %v992 = vpop.f32.mrb[0].mxu0
    %v993 = vadd.f32 %v861, %v992
    %v994 = vpop.f32.mrb[0].mxu0
    %995 = vdwg.mxu0
    %v996 = vmax.f32 %v934, 0.0
    %v997 = vmax.f32 %v937, 0.0
    %v998 = vmax.f32 %v942, 0.0
    %v999 = vmax.f32 %v945, 0.0
    %v1000 = vmax.f32 %v950, 0.0
    %v1001 = vmax.f32 %v953, 0.0
    %v1002 = vmax.f32 %v958, 0.0
    %v1003 = vmax.f32 %v961, 0.0
    %v1004 = vmax.f32 %v966, 0.0
    %v1005 = vmax.f32 %v969, 0.0
    %v1006 = vmax.f32 %v974, 0.0
    %v1007 = vmax.f32 %v977, 0.0
    %v1008 = vmax.f32 %v982, 0.0
    %v1009 = vmax.f32 %v985, 0.0
    %v1010 = vmax.f32 %v990, 0.0
    %v1011 = vmax.f32 %v993, 0.0
    %v1012 = vpack.c.bf16 %v997, %v996
    %v1013 = vpack.c.bf16 %v999, %v998
    %v1014 = vpack.c.bf16 %v1001, %v1000
    %v1015 = vpack.c.bf16 %v1003, %v1002
    %v1016 = vpack.c.bf16 %v1005, %v1004
    %v1017 = vpack.c.bf16 %v1007, %v1006
    %v1018 = vpack.c.bf16 %v1009, %v1008
    %v1019 = vpack.c.bf16 %v1011, %v1010
    %v1028 = vunpack.c.l.b16 %v1012
    %v1029 = vunpack.c.h.b16 %v1012
    %v1030 = vunpack.c.l.b16 %v1013
    %v1031 = vunpack.c.h.b16 %v1013
    %v1032 = vunpack.c.l.b16 %v1014
    %v1033 = vunpack.c.h.b16 %v1014
    %v1034 = vunpack.c.l.b16 %v1015
    %v1035 = vunpack.c.h.b16 %v1015
    %v1036 = vunpack.c.l.b16 %v1016
    %v1037 = vunpack.c.h.b16 %v1016
    %v1038 = vunpack.c.l.b16 %v1017
    %v1039 = vunpack.c.h.b16 %v1017
    %v1040 = vunpack.c.l.b16 %v1018
    %v1041 = vunpack.c.h.b16 %v1018
    %v1042 = vunpack.c.l.b16 %v1019
    %v1043 = vunpack.c.h.b16 %v1019
    %v1044 = vpack.c.b16 %v1028, %v1028
    %v1045 = vpack.c.b16 %v1029, %v1029
    %v1046 = vpack.c.b16 %v1030, %v1030
    %v1047 = vpack.c.b16 %v1031, %v1031
    %v1048 = vpack.c.b16 %v1032, %v1032
    %v1049 = vpack.c.b16 %v1033, %v1033
    %v1050 = vpack.c.b16 %v1034, %v1034
    %v1051 = vpack.c.b16 %v1035, %v1035
    %v1052 = vpack.c.b16 %v1036, %v1036
    %v1053 = vpack.c.b16 %v1037, %v1037
    %v1054 = vpack.c.b16 %v1038, %v1038
    %v1055 = vpack.c.b16 %v1039, %v1039
    %v1056 = vpack.c.b16 %v1040, %v1040
    %v1057 = vpack.c.b16 %v1041, %v1041
    %v1058 = vpack.c.b16 %v1042, %v1042
    %v1059 = vpack.c.b16 %v1043, %v1043
    %1076 = vst [vmem:[#allocation2] sm:$0xf] %v1044
    %1077 = vst [vmem:[#allocation2 + $0x4] sm:$0xf] %v1045
    %1078 = vst [vmem:[#allocation2 + $0x8] sm:$0xf] %v1046
    %1079 = vst [vmem:[#allocation2 + $0xc] sm:$0xf] %v1047
    %1080 = vst [vmem:[#allocation2 + $0x10] sm:$0xf] %v1048
    %1081 = vst [vmem:[#allocation2 + $0x14] sm:$0xf] %v1049
    %1082 = vst [vmem:[#allocation2 + $0x18] sm:$0xf] %v1050
    %1083 = vst [vmem:[#allocation2 + $0x1c] sm:$0xf] %v1051
    %1084 = vst [vmem:[#allocation2 + $0x20] sm:$0xf] %v1052
    %1085 = vst [vmem:[#allocation2 + $0x24] sm:$0xf] %v1053
    %1086 = vst [vmem:[#allocation2 + $0x28] sm:$0xf] %v1054
    %1087 = vst [vmem:[#allocation2 + $0x2c] sm:$0xf] %v1055
    %1088 = vst [vmem:[#allocation2 + $0x30] sm:$0xf] %v1056
    %1089 = vst [vmem:[#allocation2 + $0x34] sm:$0xf] %v1057
    %1090 = vst [vmem:[#allocation2 + $0x38] sm:$0xf] %v1058
    %1091 = vst [vmem:[#allocation2 + $0x3c] sm:$0xf] %v1059
    %v1092 = vadd.f32 %v996, %v997
    %v1093 = vadd.f32 %v1092, %v998
    %v1094 = vadd.f32 %v1093, %v999
    %v1095 = vadd.f32 %v1094, %v1000
    %v1096 = vadd.f32 %v1095, %v1001
    %v1097 = vadd.f32 %v1096, %v1002
    %v1098 = vadd.f32 %v1097, %v1003
    %v1099 = vrot.slane %v1098, 4
    %v1100 = vadd.f32 %v1098, %v1099
    %v1101 = vrot.slane %v1100, 2
    %v1102 = vadd.f32 %v1100, %v1101
    %v1103 = vrot.slane %v1102, 1
    %v1104 = vadd.f32 %v1102, %v1103
    %v1105 = vadd.f32 %v1004, %v1005
    %v1106 = vadd.f32 %v1105, %v1006
    %v1107 = vadd.f32 %v1106, %v1007
    %v1108 = vadd.f32 %v1107, %v1008
    %v1109 = vadd.f32 %v1108, %v1009
    %v1110 = vadd.f32 %v1109, %v1010
    %v1111 = vadd.f32 %v1110, %v1011
    %v1112 = vrot.slane %v1111, 4
    %v1113 = vadd.f32 %v1111, %v1112
    %v1114 = vrot.slane %v1113, 2
    %v1115 = vadd.f32 %v1113, %v1114
    %v1116 = vrot.slane %v1115, 1
    %v1117 = vadd.f32 %v1115, %v1116
    %1118 = vst [vmem:[#allocation4] sm:$0x1] %v1104
    %1119 = vst [vmem:[#allocation4 + $0x1] sm:$0x1] %v1117
    // Predicated region
    $region14: #{tpu_custom_call.1} parent=1 // pred_check
      _
    $region15: #{tpu_custom_call.1} parent=1 // pred_check_branch
      %1121 = sbr.rel (0) target = $region17
    $region16: #{tpu_custom_call.1} parent=1 // pred_region
      %s1123 = ssub.s32 1024, 1024
      %1124 = vsyncadd [#allocation3], %s1123
      %s1125 = sshll.u32 [#allocation2], 4
      %s1126 = int_to_ptr.vmem [resolvable:$true] %s1125
      %1131 = dma.vmem_to_hbm [thread:$0]  %s1126, 1024, %s3, [#allocation3], 64, 64, 4
    $region17: #{tpu_custom_call.1} parent=1 // pred_fallthru
      _
    // Predicated region
    $region18: #{tpu_custom_call.1} parent=1 // pred_check
      _
    $region19: #{tpu_custom_call.1} parent=1 // pred_check_branch
      %1133 = sbr.rel (0) target = $region21
    $region20: #{tpu_custom_call.1} parent=1 // pred_region
      %s1135 = ssub.s32 32, 32
      %1136 = vsyncadd [#allocation5], %s1135
      %s1137 = sshll.u32 [#allocation4], 4
      %s1138 = int_to_ptr.vmem [resolvable:$true] %s1137
      %1143 = dma.vmem_to_hbm [thread:$0]  %s1138, 32, %s4, [#allocation5], 16, 16, 1
    $region21: #{tpu_custom_call.1} parent=1 // pred_fallthru
      _
    // Predicated region
    $region22: #{tpu_custom_call.1} parent=1 // pred_check
      _
    $region23: #{tpu_custom_call.1} parent=1 // pred_check_branch
      %1145 = sbr.rel (0) target = $region25
    $region24: #{tpu_custom_call.1} parent=1 // pred_region
      %1146 = dma.done [#allocation3], 1024
    $region25: #{tpu_custom_call.1} parent=1 // pred_fallthru
      _
    // Predicated region
    $region26: #{tpu_custom_call.1} parent=1 // pred_check
      _
    $region27: #{tpu_custom_call.1} parent=1 // pred_check_branch
      %1148 = sbr.rel (0) target = $region29
    $region28: #{tpu_custom_call.1} parent=1 // pred_region
      %1149 = dma.done [#allocation5], 32
    $region29: #{tpu_custom_call.1} parent=1 // pred_fallthru
      _
    %1150 = vsyncpa [#allocation3], 1
    %1151 = vsyncpa [#allocation5], 1

</llo_original>
